<compile_context>
chip_gen: v7x
topology: tpu7x:2x2x1
jax: 0.10.0
libtpu: 0.0.40
codegen_flags: <defaults>
</compile_context>

<pallas_src>
import functools
import math

import jax
import jax.numpy as jnp
from jax.experimental import pallas as pl
from jax.experimental.pallas import tpu as pltpu

_LAT = 32          # latent width  (lanes [0, 32) of the output slab)
_OUT_PAD = 96      # padded logit width (lanes [32, 128); real logits in [32, 34))
_SLAB = _LAT + _OUT_PAD   # 128 = one full vreg lane width


def _round_up(v, m):
    return (v + m - 1) // m * m


def _mlp_kernel(x_ref, w1_ref, b1_ref, w2_ref, b2_ref, w3_ref, b3_ref,
                w4_ref, b4_ref, out_ref):
    """One batch tile of the full forward pass.

    net1: Linear(D,256) -> ReLU -> Linear(256,128) -> ReLU -> Linear(128,32)
    net2: ReLU -> Linear(32,2)   (final Linear zero-padded to 96 output columns)

    Output slab (TM, 128): lanes [0,32) = latent, [32,34) = logits, rest zeros.
    bf16 MXU inputs, f32 accumulation / bias / ReLU, single lane-dense store.
    """
    x = x_ref[...].astype(jnp.bfloat16)
    h = jnp.dot(x, w1_ref[...], preferred_element_type=jnp.float32) + b1_ref[...]
    h = jnp.maximum(h, 0.0)
    h = jnp.dot(h.astype(jnp.bfloat16), w2_ref[...],
                preferred_element_type=jnp.float32) + b2_ref[...]
    h = jnp.maximum(h, 0.0)
    latent = jnp.dot(h.astype(jnp.bfloat16), w3_ref[...],
                     preferred_element_type=jnp.float32) + b3_ref[...]
    z = jnp.maximum(latent, 0.0)
    logits = jnp.dot(z.astype(jnp.bfloat16), w4_ref[...],
                     preferred_element_type=jnp.float32) + b4_ref[...]
    out_ref[...] = jnp.concatenate([latent, logits], axis=-1)  # one 128-lane store


def init_params(key, input_dim):
    """PyTorch nn.Linear default init (U(-1/sqrt(fan_in), 1/sqrt(fan_in))).

    Weights stored pre-transposed as (in, out) in bf16 (MXU inputs); biases kept
    f32 as (1, out) (added to f32 accumulators). Final layer padded 2 -> 96 cols
    with zeros so the output slab is lane-dense.
    """
    dims = [(input_dim, 256), (256, 128), (128, 32), (32, 2)]
    params = {}
    for idx, (fan_in, fan_out) in enumerate(dims, start=1):
        key, kw, kb = jax.random.split(key, 3)
        bound = 1.0 / math.sqrt(fan_in)
        w = jax.random.uniform(kw, (fan_in, fan_out), jnp.float32, -bound, bound)
        b = jax.random.uniform(kb, (1, fan_out), jnp.float32, -bound, bound)
        if idx == 4:  # zero-pad Linear(32,2) to 96 output columns
            w = jnp.pad(w, ((0, 0), (0, _OUT_PAD - fan_out)))
            b = jnp.pad(b, ((0, 0), (0, _OUT_PAD - fan_out)))
        params[f"w{idx}"] = w.astype(jnp.bfloat16)
        params[f"b{idx}"] = b
    return params


def _choose_tile_m(n, d):
    # Keep the double-buffered f32 x tile within ~24 MiB so the kernel (tile +
    # resident bf16 weights + output buffers) still fits v7x's 64 MiB VMEM.
    x_budget = 24 * 1024 * 1024
    cap = max(8, (x_budget // (2 * d * 4)) // 8 * 8)
    return int(min(512, cap, _round_up(max(n, 8), 8)))


@functools.partial(jax.jit, static_argnames=("return_latent",))
def simple_fc_forward(x, params, return_latent=False):
    """x: (N, input_dim) float32. Mirrors SimpleFCTranscriptomics.forward."""
    n, d = x.shape
    tm = _choose_tile_m(n, d)
    n_pad = _round_up(n, tm)
    if n_pad != n:
        x = jnp.pad(x, ((0, n_pad - n), (0, 0)))
    grid = (n_pad // tm,)

    const = lambda i: (0, 0)   # weights/biases: DMA'd once, VMEM-resident
    weight_bytes = ((d * 256 + 256 * 128 + 128 * _LAT + _LAT * _OUT_PAD) * 2
                    + (256 + 128 + _LAT + _OUT_PAD) * 4)
    needed = 2 * tm * d * 4 + 2 * tm * _SLAB * 4 + weight_bytes
    vmem_limit = int(min(max(needed * 3 // 2, 32 * 1024 * 1024),
                         96 * 1024 * 1024))

    cost = pl.CostEstimate(
        flops=2 * n_pad * (d * 256 + 256 * 128 + 128 * _LAT + _LAT * _OUT_PAD),
        transcendentals=0,
        bytes_accessed=n_pad * d * 4 + weight_bytes + n_pad * _SLAB * 4,
    )

    slab = pl.pallas_call(
        _mlp_kernel,
        out_shape=jax.ShapeDtypeStruct((n_pad, _SLAB), jnp.float32),
        grid=grid,
        in_specs=[
            pl.BlockSpec((tm, d), lambda i: (i, 0)),       # x: streamed per tile
            pl.BlockSpec((d, 256), const),                 # w1
            pl.BlockSpec((1, 256), const),                 # b1
            pl.BlockSpec((256, 128), const),               # w2
            pl.BlockSpec((1, 128), const),                 # b2
            pl.BlockSpec((128, _LAT), const),              # w3
            pl.BlockSpec((1, _LAT), const),                # b3
            pl.BlockSpec((_LAT, _OUT_PAD), const),         # w4 (padded)
            pl.BlockSpec((1, _OUT_PAD), const),            # b4 (padded)
        ],
        out_specs=pl.BlockSpec((tm, _SLAB), lambda i: (i, 0)),
        compiler_params=pltpu.CompilerParams(
            dimension_semantics=("parallel",),             # megacore split on v7x
            vmem_limit_bytes=vmem_limit),
        cost_estimate=cost,
    )(x, params["w1"], params["b1"], params["w2"], params["b2"],
      params["w3"], params["b3"], params["w4"], params["b4"])

    if return_latent:
        return slab[:n, :_LAT]
    return slab[:n, _LAT:_LAT + 2]


if __name__ == "__main__":
    key = jax.random.PRNGKey(0)
    kx, kp = jax.random.split(key)
    batch, input_dim = 2, 64
    x = jax.random.normal(kx, (batch, input_dim), jnp.float32)
    params = init_params(kp, input_dim)

    logits = jax.block_until_ready(simple_fc_forward(x, params))
    assert logits.shape == (batch, 2), logits.shape
    assert bool(jnp.all(jnp.isfinite(logits)))

    latent = jax.block_until_ready(simple_fc_forward(x, params, return_latent=True))
    assert latent.shape == (batch, _LAT), latent.shape
    assert bool(jnp.all(jnp.isfinite(latent)))

    # Pure-JAX reference (f32 math on the same bf16 weights); generous tolerance
    # covers the in-kernel bf16 casts of x / activations.
    def ref(xv, p):
        h = jnp.maximum(xv @ p["w1"].astype(jnp.float32) + p["b1"], 0.0)
        h = jnp.maximum(h @ p["w2"].astype(jnp.float32) + p["b2"], 0.0)
        lat = h @ p["w3"].astype(jnp.float32) + p["b3"]
        out = jnp.maximum(lat, 0.0) @ p["w4"].astype(jnp.float32) + p["b4"]
        return lat, out[:, :2]

    lat_ref, logits_ref = ref(x, params)
    assert bool(jnp.allclose(latent, lat_ref, atol=5e-2, rtol=5e-2))
    assert bool(jnp.allclose(logits, logits_ref, atol=5e-2, rtol=5e-2))

    print("KERNEL_OK")
</pallas_src>

<mosaic_0001>
module attributes {stable_mosaic.version = 11 : i64} {
  func.func @_mlp_kernel(%arg0: i32, %arg1: memref<8x64xf32, #tpu.memory_space<vmem>>, %arg2: memref<64x256xbf16, #tpu.memory_space<vmem>>, %arg3: memref<1x256xf32, #tpu.memory_space<vmem>>, %arg4: memref<256x128xbf16, #tpu.memory_space<vmem>>, %arg5: memref<1x128xf32, #tpu.memory_space<vmem>>, %arg6: memref<128x32xbf16, #tpu.memory_space<vmem>>, %arg7: memref<1x32xf32, #tpu.memory_space<vmem>>, %arg8: memref<32x96xbf16, #tpu.memory_space<vmem>>, %arg9: memref<1x96xf32, #tpu.memory_space<vmem>>, %arg10: memref<8x128xf32, #tpu.memory_space<vmem>>) attributes {dimension_semantics = [#tpu.dimension_semantics<parallel>], iteration_bounds = array<i64: 1>, scalar_prefetch = 0 : i64, scratch_operands = 0 : i64, tpu.core_type = #tpu.core_type<tc>, window_params = [{transform_indices = @transform_0, window_bounds = array<i64: 8, 64>}, {pipeline_mode = #tpu.pipeline_mode<synchronous>, transform_indices = @transform_1, window_bounds = array<i64: 64, 256>}, {pipeline_mode = #tpu.pipeline_mode<synchronous>, transform_indices = @transform_2, window_bounds = array<i64: 1, 256>}, {pipeline_mode = #tpu.pipeline_mode<synchronous>, transform_indices = @transform_3, window_bounds = array<i64: 256, 128>}, {pipeline_mode = #tpu.pipeline_mode<synchronous>, transform_indices = @transform_4, window_bounds = array<i64: 1, 128>}, {pipeline_mode = #tpu.pipeline_mode<synchronous>, transform_indices = @transform_5, window_bounds = array<i64: 128, 32>}, {pipeline_mode = #tpu.pipeline_mode<synchronous>, transform_indices = @transform_6, window_bounds = array<i64: 1, 32>}, {pipeline_mode = #tpu.pipeline_mode<synchronous>, transform_indices = @transform_7, window_bounds = array<i64: 32, 96>}, {pipeline_mode = #tpu.pipeline_mode<synchronous>, transform_indices = @transform_8, window_bounds = array<i64: 1, 96>}, {transform_indices = @transform_9, window_bounds = array<i64: 8, 128>}]} {
    %c0 = arith.constant 0 : index
    %c0_0 = arith.constant 0 : index
    %0 = vector.load %arg1[%c0, %c0_0] : memref<8x64xf32, #tpu.memory_space<vmem>>, vector<8x64xf32>
    %1 = arith.truncf %0 : vector<8x64xf32> to vector<8x64xbf16>
    %c0_1 = arith.constant 0 : index
    %c0_2 = arith.constant 0 : index
    %2 = vector.load %arg2[%c0_1, %c0_2] : memref<64x256xbf16, #tpu.memory_space<vmem>>, vector<64x256xbf16>
    %cst = arith.constant dense<0.000000e+00> : vector<8x256xf32>
    %3 = tpu.matmul %1, %2, %cst {dimension_numbers = #tpu.dot_dimension_numbers<[1], [0], [0], [1], [0, 0, 1, 1], [], []>} : vector<8x64xbf16>, vector<64x256xbf16>, vector<8x256xf32> -> vector<8x256xf32>
    %c0_3 = arith.constant 0 : index
    %c0_4 = arith.constant 0 : index
    %4 = vector.load %arg3[%c0_3, %c0_4] : memref<1x256xf32, #tpu.memory_space<vmem>>, vector<1x256xf32>
    %5 = vector.broadcast %4 : vector<1x256xf32> to vector<8x256xf32>
    %6 = arith.addf %3, %5 : vector<8x256xf32>
    %cst_5 = arith.constant 0.000000e+00 : f32
    %7 = vector.broadcast %cst_5 : f32 to vector<8x256xf32>
    %8 = arith.maximumf %6, %7 : vector<8x256xf32>
    %9 = arith.truncf %8 : vector<8x256xf32> to vector<8x256xbf16>
    %c0_6 = arith.constant 0 : index
    %c0_7 = arith.constant 0 : index
    %10 = vector.load %arg4[%c0_6, %c0_7] : memref<256x128xbf16, #tpu.memory_space<vmem>>, vector<256x128xbf16>
    %cst_8 = arith.constant dense<0.000000e+00> : vector<8x128xf32>
    %11 = tpu.matmul %9, %10, %cst_8 {dimension_numbers = #tpu.dot_dimension_numbers<[1], [0], [0], [1], [0, 0, 1, 1], [], []>} : vector<8x256xbf16>, vector<256x128xbf16>, vector<8x128xf32> -> vector<8x128xf32>
    %c0_9 = arith.constant 0 : index
    %c0_10 = arith.constant 0 : index
    %12 = vector.load %arg5[%c0_9, %c0_10] : memref<1x128xf32, #tpu.memory_space<vmem>>, vector<1x128xf32>
    %13 = vector.broadcast %12 : vector<1x128xf32> to vector<8x128xf32>
    %14 = arith.addf %11, %13 : vector<8x128xf32>
    %cst_11 = arith.constant 0.000000e+00 : f32
    %15 = vector.broadcast %cst_11 : f32 to vector<8x128xf32>
    %16 = arith.maximumf %14, %15 : vector<8x128xf32>
    %17 = arith.truncf %16 : vector<8x128xf32> to vector<8x128xbf16>
    %c0_12 = arith.constant 0 : index
    %c0_13 = arith.constant 0 : index
    %18 = vector.load %arg6[%c0_12, %c0_13] : memref<128x32xbf16, #tpu.memory_space<vmem>>, vector<128x32xbf16>
    %cst_14 = arith.constant dense<0.000000e+00> : vector<8x32xf32>
    %19 = tpu.matmul %17, %18, %cst_14 {dimension_numbers = #tpu.dot_dimension_numbers<[1], [0], [0], [1], [0, 0, 1, 1], [], []>} : vector<8x128xbf16>, vector<128x32xbf16>, vector<8x32xf32> -> vector<8x32xf32>
    %c0_15 = arith.constant 0 : index
    %c0_16 = arith.constant 0 : index
    %20 = vector.load %arg7[%c0_15, %c0_16] : memref<1x32xf32, #tpu.memory_space<vmem>>, vector<1x32xf32>
    %21 = vector.broadcast %20 : vector<1x32xf32> to vector<8x32xf32>
    %22 = arith.addf %19, %21 : vector<8x32xf32>
    %cst_17 = arith.constant 0.000000e+00 : f32
    %23 = vector.broadcast %cst_17 : f32 to vector<8x32xf32>
    %24 = arith.maximumf %22, %23 : vector<8x32xf32>
    %25 = arith.truncf %24 : vector<8x32xf32> to vector<8x32xbf16>
    %c0_18 = arith.constant 0 : index
    %c0_19 = arith.constant 0 : index
    %26 = vector.load %arg8[%c0_18, %c0_19] : memref<32x96xbf16, #tpu.memory_space<vmem>>, vector<32x96xbf16>
    %cst_20 = arith.constant dense<0.000000e+00> : vector<8x96xf32>
    %27 = tpu.matmul %25, %26, %cst_20 {dimension_numbers = #tpu.dot_dimension_numbers<[1], [0], [0], [1], [0, 0, 1, 1], [], []>} : vector<8x32xbf16>, vector<32x96xbf16>, vector<8x96xf32> -> vector<8x96xf32>
    %c0_21 = arith.constant 0 : index
    %c0_22 = arith.constant 0 : index
    %28 = vector.load %arg9[%c0_21, %c0_22] : memref<1x96xf32, #tpu.memory_space<vmem>>, vector<1x96xf32>
    %29 = vector.broadcast %28 : vector<1x96xf32> to vector<8x96xf32>
    %30 = arith.addf %27, %29 : vector<8x96xf32>
    %31 = tpu.concatenate %22, %30 in 1 : vector<8x32xf32>, vector<8x96xf32> -> vector<8x128xf32>
    %c0_23 = arith.constant 0 : index
    %c0_24 = arith.constant 0 : index
    %32 = vector.load %arg10[%c0_23, %c0_24] : memref<8x128xf32, #tpu.memory_space<vmem>>, vector<8x128xf32>
    tpu.vector_store %arg10[%c0_23, %c0_24], %31 {strides = array<i32>} : memref<8x128xf32, #tpu.memory_space<vmem>>, vector<8x128xf32>,
    return
  }
  func.func @transform_0(%arg0: i32) -> (i32, i32) {
    %c0_i32 = arith.constant 0 : i32
    %c0_i32_0 = arith.constant 0 : i32
    return %arg0, %c0_i32 : i32, i32
  }
  func.func @transform_1(%arg0: i32) -> (i32, i32) {
    %c0_i32 = arith.constant 0 : i32
    %c0_i32_0 = arith.constant 0 : i32
    %c0_i32_1 = arith.constant 0 : i32
    return %c0_i32, %c0_i32_0 : i32, i32
  }
  func.func @transform_2(%arg0: i32) -> (i32, i32) {
    %c0_i32 = arith.constant 0 : i32
    %c0_i32_0 = arith.constant 0 : i32
    %c0_i32_1 = arith.constant 0 : i32
    return %c0_i32, %c0_i32_0 : i32, i32
  }
  func.func @transform_3(%arg0: i32) -> (i32, i32) {
    %c0_i32 = arith.constant 0 : i32
    %c0_i32_0 = arith.constant 0 : i32
    %c0_i32_1 = arith.constant 0 : i32
    return %c0_i32, %c0_i32_0 : i32, i32
  }
  func.func @transform_4(%arg0: i32) -> (i32, i32) {
    %c0_i32 = arith.constant 0 : i32
    %c0_i32_0 = arith.constant 0 : i32
    %c0_i32_1 = arith.constant 0 : i32
    return %c0_i32, %c0_i32_0 : i32, i32
  }
  func.func @transform_5(%arg0: i32) -> (i32, i32) {
    %c0_i32 = arith.constant 0 : i32
    %c0_i32_0 = arith.constant 0 : i32
    %c0_i32_1 = arith.constant 0 : i32
    return %c0_i32, %c0_i32_0 : i32, i32
  }
  func.func @transform_6(%arg0: i32) -> (i32, i32) {
    %c0_i32 = arith.constant 0 : i32
    %c0_i32_0 = arith.constant 0 : i32
    %c0_i32_1 = arith.constant 0 : i32
    return %c0_i32, %c0_i32_0 : i32, i32
  }
  func.func @transform_7(%arg0: i32) -> (i32, i32) {
    %c0_i32 = arith.constant 0 : i32
    %c0_i32_0 = arith.constant 0 : i32
    %c0_i32_1 = arith.constant 0 : i32
    return %c0_i32, %c0_i32_0 : i32, i32
  }
  func.func @transform_8(%arg0: i32) -> (i32, i32) {
    %c0_i32 = arith.constant 0 : i32
    %c0_i32_0 = arith.constant 0 : i32
    %c0_i32_1 = arith.constant 0 : i32
    return %c0_i32, %c0_i32_0 : i32, i32
  }
  func.func @transform_9(%arg0: i32) -> (i32, i32) {
    %c0_i32 = arith.constant 0 : i32
    %c0_i32_0 = arith.constant 0 : i32
    return %arg0, %c0_i32 : i32, i32
  }
}

</mosaic_0001>

<llo_original>
// kernel: simple_fc_forward.1
$region0: #{simple_fc_forward.1}
  #allocation0 [shape = 'u32[]', space=smem, size = 0x4, offset = 0x4, fixed_abs, tag = 'smem constant byte address 0x4 - core index']
  #allocation1 [shape = 'u32[144,128]{1,0:T(1,128)}', space=vmem, size = 0x12000, scoped, tag = 'internal scratch']
  %s0 = inlined_call_operand.vmem [shape: f32[8,64], index: 0, kind: input, shape index: {}]
  %s1 = inlined_call_operand.vmem [shape: bf16[64,256], index: 1, kind: input, shape index: {}]
  %s2 = inlined_call_operand.vmem [shape: f32[1,256], index: 2, kind: input, shape index: {}]
  %s3 = inlined_call_operand.hbm [shape: bf16[256,128], index: 3, kind: input, shape index: {}]
  %s4 = inlined_call_operand.vmem [shape: f32[1,128], index: 4, kind: input, shape index: {}]
  %s5 = inlined_call_operand.vmem [shape: bf16[128,32], index: 5, kind: input, shape index: {}]
  %s6 = inlined_call_operand.vmem [shape: f32[1,32], index: 6, kind: input, shape index: {}]
  %s7 = inlined_call_operand.vmem [shape: bf16[32,96], index: 7, kind: input, shape index: {}]
  %s8 = inlined_call_operand.vmem [shape: f32[1,96], index: 8, kind: input, shape index: {}]
  %s9 = inlined_call_operand.vmem [shape: f32[8,128], index: 9, kind: output, shape index: {}]
  %s10 = sld [smem:[#allocation0]]
  $region50: #{simple_fc_forward.1} parent=0
    _
  %s12 = ssub.s32 1, %s10
  %s13 = scalar_select 0, %s12, %s10
  $region1: #{simple_fc_forward.1} parent=0
    #allocation2 [shape = 'u8[65536]{0}', space=vmem, size = 0x10000, scoped, tag = 'input window, operand 3, single buffered']
    #allocation3 [shape = 's32[1]{0}', space=sflag, size = 0x4, scoped, tag = 'scoped memory for simple_fc_forward.1']
    %14 = vsyncpa [#allocation3], 0
    // Predicated region
    $region2: #{simple_fc_forward.1} parent=1 // pred_check
      _
    $region3: #{simple_fc_forward.1} parent=1 // pred_check_branch
      %16 = sbr.rel (0) target = $region5
    $region4: #{simple_fc_forward.1} parent=1 // pred_region
      _
    $region5: #{simple_fc_forward.1} parent=1 // pred_fallthru
      _
    // Predicated region
    $region6: #{simple_fc_forward.1} parent=1 // pred_check
      _
    $region7: #{simple_fc_forward.1} parent=1 // pred_check_branch
      %18 = sbr.rel (0) target = $region9
    $region8: #{simple_fc_forward.1} parent=1 // pred_region
      _
    $region9: #{simple_fc_forward.1} parent=1 // pred_fallthru
      _
    // Predicated region
    $region10: #{simple_fc_forward.1} parent=1 // pred_check
      _
    $region11: #{simple_fc_forward.1} parent=1 // pred_check_branch
      %20 = sbr.rel (0) target = $region13
    $region12: #{simple_fc_forward.1} parent=1 // pred_region
      _
    $region13: #{simple_fc_forward.1} parent=1 // pred_fallthru
      _
    // Predicated region
    $region14: #{simple_fc_forward.1} parent=1 // pred_check
      _
    $region15: #{simple_fc_forward.1} parent=1 // pred_check_branch
      %22 = sbr.rel (0) target = $region17
    $region16: #{simple_fc_forward.1} parent=1 // pred_region
      %s24 = ssub.s32 2048, 2048
      %25 = vsyncadd [#allocation3], %s24
      %s26 = sshll.u32 [#allocation2], 4
      %s27 = int_to_ptr.vmem [resolvable:$true] %s26
      %32 = dma.hbm_to_vmem [thread:$0]  %s3, 2048, %s27, [#allocation3], 64, 64, 4
    $region17: #{simple_fc_forward.1} parent=1 // pred_fallthru
      _
    // Predicated region
    $region18: #{simple_fc_forward.1} parent=1 // pred_check
      _
    $region19: #{simple_fc_forward.1} parent=1 // pred_check_branch
      %34 = sbr.rel (0) target = $region21
    $region20: #{simple_fc_forward.1} parent=1 // pred_region
      _
    $region21: #{simple_fc_forward.1} parent=1 // pred_fallthru
      _
    // Predicated region
    $region22: #{simple_fc_forward.1} parent=1 // pred_check
      _
    $region23: #{simple_fc_forward.1} parent=1 // pred_check_branch
      %36 = sbr.rel (0) target = $region25
    $region24: #{simple_fc_forward.1} parent=1 // pred_region
      _
    $region25: #{simple_fc_forward.1} parent=1 // pred_fallthru
      _
    // Predicated region
    $region26: #{simple_fc_forward.1} parent=1 // pred_check
      _
    $region27: #{simple_fc_forward.1} parent=1 // pred_check_branch
      %38 = sbr.rel (0) target = $region29
    $region28: #{simple_fc_forward.1} parent=1 // pred_region
      _
    $region29: #{simple_fc_forward.1} parent=1 // pred_fallthru
      _
    // Predicated region
    $region30: #{simple_fc_forward.1} parent=1 // pred_check
      _
    $region31: #{simple_fc_forward.1} parent=1 // pred_check_branch
      %40 = sbr.rel (0) target = $region33
    $region32: #{simple_fc_forward.1} parent=1 // pred_region
      _
    $region33: #{simple_fc_forward.1} parent=1 // pred_fallthru
      _
    // Predicated region
    $region34: #{simple_fc_forward.1} parent=1 // pred_check
      _
    $region35: #{simple_fc_forward.1} parent=1 // pred_check_branch
      %42 = sbr.rel (0) target = $region37
    $region36: #{simple_fc_forward.1} parent=1 // pred_region
      _
    $region37: #{simple_fc_forward.1} parent=1 // pred_fallthru
      _
    // Predicated region
    $region38: #{simple_fc_forward.1} parent=1 // pred_check
      _
    $region39: #{simple_fc_forward.1} parent=1 // pred_check_branch
      %44 = sbr.rel (0) target = $region41
    $region40: #{simple_fc_forward.1} parent=1 // pred_region
      %45 = dma.done [#allocation3], 2048
    $region41: #{simple_fc_forward.1} parent=1 // pred_fallthru
      _
    %v47 = vld [vmem:[%s0] sm:$0xff]
    %v48 = vpack.c.bf16 %v47, %v47
    %v49 = vld [vmem:[%s1] sm:$0xff]
    %v50 = vld [vmem:[%s1 + $0x8] sm:$0xff]
    %v51 = vld [vmem:[%s1 + $0x10] sm:$0xff]
    %v52 = vld [vmem:[%s1 + $0x18] sm:$0xff]
    %v53 = vld [vmem:[%s1 + $0x20] sm:$0xff]
    %v54 = vld [vmem:[%s1 + $0x28] sm:$0xff]
    %v55 = vld [vmem:[%s1 + $0x30] sm:$0xff]
    %v56 = vld [vmem:[%s1 + $0x38] sm:$0xff]
    %v57 = vld [vmem:[%s2] sm:$0x3]
    %v59 = vlaneseq
    %v60 = vshrl.u32 %v59, 7
    %v61 = vsub.s32 0, %v60
    %v62 = vrot.slane %v57, %v61
    %v63 = vlaneseq
    %v64 = vshrl.u32 %v63, 7
    %v65 = vsub.s32 1, %v64
    %v66 = vrot.slane %v57, %v65
    %v77 = vunpack.c.l.b16 %v49
    %v78 = vunpack.c.h.b16 %v49
    %v79 = vunpack.c.l.b16 %v50
    %v80 = vunpack.c.h.b16 %v50
    %v81 = vunpack.c.l.b16 %v51
    %v82 = vunpack.c.h.b16 %v51
    %v83 = vunpack.c.l.b16 %v52
    %v84 = vunpack.c.h.b16 %v52
    %v85 = vunpack.c.l.b16 %v53
    %v86 = vunpack.c.h.b16 %v53
    %v87 = vunpack.c.l.b16 %v54
    %v88 = vunpack.c.h.b16 %v54
    %v89 = vunpack.c.l.b16 %v55
    %v90 = vunpack.c.h.b16 %v55
    %v91 = vunpack.c.l.b16 %v56
    %v92 = vunpack.c.h.b16 %v56
    %v93 = vpack.c.b16 %v79, %v77
    %v94 = vpack.c.b16 %v80, %v78
    %v95 = vpack.c.b16 %v83, %v81
    %v96 = vpack.c.b16 %v84, %v82
    %v97 = vpack.c.b16 %v87, %v85
    %v98 = vpack.c.b16 %v88, %v86
    %v99 = vpack.c.b16 %v91, %v89
    %v100 = vpack.c.b16 %v92, %v90
    %vm109 = vcmask 523264
    %v111 = vsel %vm109, %v48, 0
    %113 = vmatprep.subr.bf16.mxu0 %v94
    %114 = vmatpush1.bf16.msra.mxu0 %v93
    %115 = vmatprep.subr.bf16.mxu0 %v96
    %116 = vmatpush1.bf16.msra.mxu0 %v95
    %117 = vmatprep.subr.bf16.mxu0 %v98
    %118 = vmatpush1.bf16.msra.mxu0 %v97
    %119 = vmatprep.subr.bf16.mxu0 %v100
    %120 = vmatpush1.bf16.msra.mxu0 %v99
    %121 = vmatprep.subr.bf16.mxu0 0
    %122 = vmatpush1.bf16.msra.mxu0 0
    %123 = vmatprep.subr.bf16.mxu0 0
    %124 = vmatpush1.bf16.msra.mxu0 0
    %125 = vmatprep.subr.bf16.mxu0 0
    %126 = vmatpush1.bf16.msra.mxu0 0
    %127 = vmatprep.subr.bf16.mxu0 0
    %128 = vmatpush1.bf16.msra.mxu0 0
    %129 = vmatprep.subr.bf16.mxu0 0
    %130 = vmatpush1.bf16.msra.mxu0 0
    %131 = vmatprep.subr.bf16.mxu0 0
    %132 = vmatpush1.bf16.msra.mxu0 0
    %133 = vmatprep.subr.bf16.mxu0 0
    %134 = vmatpush1.bf16.msra.mxu0 0
    %135 = vmatprep.subr.bf16.mxu0 0
    %136 = vmatpush1.bf16.msra.mxu0 0
    %137 = vmatprep.subr.bf16.mxu0 0
    %138 = vmatpush1.bf16.msra.mxu0 0
    %139 = vmatprep.subr.bf16.mxu0 0
    %140 = vmatpush1.bf16.msra.mxu0 0
    %141 = vmatprep.subr.bf16.mxu0 0
    %142 = vmatpush1.bf16.msra.mxu0 0
    %143 = vmatprep.subr.bf16.mxu0 0
    %144 = vmatpush1.bf16.msra.mxu0 0
    %145 = vmatprep.mubr.bf16.mxu0 0
    %146 = vmatmul.mubr.bf16.gmra.mrb[0].mxu0 %v111
    %v147 = vpop.f32.mrb[0].mxu0
    %v148 = vadd.f32 %v62, %v147
    %v149 = vpop.f32.mrb[0].mxu0
    %v150 = vadd.f32 %v66, %v149
    %v151 = vpop.f32.mrb[0].mxu0
    %v152 = vpop.f32.mrb[0].mxu0
    %153 = vdwg.mxu0
    %v154 = vmax.f32 %v148, 0.0
    %v155 = vmax.f32 %v150, 0.0
    %v156 = vpack.c.bf16 %v154, %v154
    %v157 = vpack.c.bf16 %v155, %v155
    %v158 = vld [vmem:[#allocation2] sm:$0xf]
    %v159 = vld [vmem:[#allocation2 + $0x4] sm:$0xf]
    %v160 = vld [vmem:[#allocation2 + $0x8] sm:$0xf]
    %v161 = vld [vmem:[#allocation2 + $0xc] sm:$0xf]
    %v162 = vld [vmem:[#allocation2 + $0x10] sm:$0xf]
    %v163 = vld [vmem:[#allocation2 + $0x14] sm:$0xf]
    %v164 = vld [vmem:[#allocation2 + $0x18] sm:$0xf]
    %v165 = vld [vmem:[#allocation2 + $0x1c] sm:$0xf]
    %v166 = vld [vmem:[#allocation2 + $0x20] sm:$0xf]
    %v167 = vld [vmem:[#allocation2 + $0x24] sm:$0xf]
    %v168 = vld [vmem:[#allocation2 + $0x28] sm:$0xf]
    %v169 = vld [vmem:[#allocation2 + $0x2c] sm:$0xf]
    %v170 = vld [vmem:[#allocation2 + $0x30] sm:$0xf]
    %v171 = vld [vmem:[#allocation2 + $0x34] sm:$0xf]
    %v172 = vld [vmem:[#allocation2 + $0x38] sm:$0xf]
    %v173 = vld [vmem:[#allocation2 + $0x3c] sm:$0xf]
    %v174 = vld [vmem:[#allocation2 + $0x40] sm:$0xf]
    %v175 = vld [vmem:[#allocation2 + $0x44] sm:$0xf]
    %v176 = vld [vmem:[#allocation2 + $0x48] sm:$0xf]
    %v177 = vld [vmem:[#allocation2 + $0x4c] sm:$0xf]
    %v178 = vld [vmem:[#allocation2 + $0x50] sm:$0xf]
    %v179 = vld [vmem:[#allocation2 + $0x54] sm:$0xf]
    %v180 = vld [vmem:[#allocation2 + $0x58] sm:$0xf]
    %v181 = vld [vmem:[#allocation2 + $0x5c] sm:$0xf]
    %v182 = vld [vmem:[#allocation2 + $0x60] sm:$0xf]
    %v183 = vld [vmem:[#allocation2 + $0x64] sm:$0xf]
    %v184 = vld [vmem:[#allocation2 + $0x68] sm:$0xf]
    %v185 = vld [vmem:[#allocation2 + $0x6c] sm:$0xf]
    %v186 = vld [vmem:[#allocation2 + $0x70] sm:$0xf]
    %v187 = vld [vmem:[#allocation2 + $0x74] sm:$0xf]
    %v188 = vld [vmem:[#allocation2 + $0x78] sm:$0xf]
    %v189 = vld [vmem:[#allocation2 + $0x7c] sm:$0xf]
    %v190 = vld [vmem:[%s4] sm:$0x1]
    %v192 = vlaneseq
    %v193 = vshrl.u32 %v192, 7
    %v194 = vsub.s32 0, %v193
    %v195 = vrot.slane %v190, %v194
    %v229 = vunpack.c.l.b16 %v158
    %v230 = vunpack.c.l.b16 %v159
    %v231 = vunpack.c.l.b16 %v160
    %v232 = vunpack.c.l.b16 %v161
    %v233 = vunpack.c.l.b16 %v162
    %v234 = vunpack.c.l.b16 %v163
    %v235 = vunpack.c.l.b16 %v164
    %v236 = vunpack.c.l.b16 %v165
    %v237 = vunpack.c.l.b16 %v166
    %v238 = vunpack.c.l.b16 %v167
    %v239 = vunpack.c.l.b16 %v168
    %v240 = vunpack.c.l.b16 %v169
    %v241 = vunpack.c.l.b16 %v170
    %v242 = vunpack.c.l.b16 %v171
    %v243 = vunpack.c.l.b16 %v172
    %v244 = vunpack.c.l.b16 %v173
    %v245 = vunpack.c.l.b16 %v174
    %v246 = vunpack.c.l.b16 %v175
    %v247 = vunpack.c.l.b16 %v176
    %v248 = vunpack.c.l.b16 %v177
    %v249 = vunpack.c.l.b16 %v178
    %v250 = vunpack.c.l.b16 %v179
    %v251 = vunpack.c.l.b16 %v180
    %v252 = vunpack.c.l.b16 %v181
    %v253 = vunpack.c.l.b16 %v182
    %v254 = vunpack.c.l.b16 %v183
    %v255 = vunpack.c.l.b16 %v184
    %v256 = vunpack.c.l.b16 %v185
    %v257 = vunpack.c.l.b16 %v186
    %v258 = vunpack.c.l.b16 %v187
    %v259 = vunpack.c.l.b16 %v188
    %v260 = vunpack.c.l.b16 %v189
    %v261 = vpack.c.b16 %v230, %v229
    %v262 = vpack.c.b16 %v232, %v231
    %v263 = vpack.c.b16 %v234, %v233
    %v264 = vpack.c.b16 %v236, %v235
    %v265 = vpack.c.b16 %v238, %v237
    %v266 = vpack.c.b16 %v240, %v239
    %v267 = vpack.c.b16 %v242, %v241
    %v268 = vpack.c.b16 %v244, %v243
    %v269 = vpack.c.b16 %v246, %v245
    %v270 = vpack.c.b16 %v248, %v247
    %v271 = vpack.c.b16 %v250, %v249
    %v272 = vpack.c.b16 %v252, %v251
    %v273 = vpack.c.b16 %v254, %v253
    %v274 = vpack.c.b16 %v256, %v255
    %v275 = vpack.c.b16 %v258, %v257
    %v276 = vpack.c.b16 %v260, %v259
    %293 = vmatprep.subr.bf16.mxu0 0
    %294 = vmatpush1.bf16.msra.mxu0 %v261
    %295 = vmatprep.subr.bf16.mxu0 0
    %296 = vmatpush1.bf16.msra.mxu0 %v262
    %297 = vmatprep.subr.bf16.mxu0 0
    %298 = vmatpush1.bf16.msra.mxu0 %v263
    %299 = vmatprep.subr.bf16.mxu0 0
    %300 = vmatpush1.bf16.msra.mxu0 %v264
    %301 = vmatprep.subr.bf16.mxu0 0
    %302 = vmatpush1.bf16.msra.mxu0 %v265
    %303 = vmatprep.subr.bf16.mxu0 0
    %304 = vmatpush1.bf16.msra.mxu0 %v266
    %305 = vmatprep.subr.bf16.mxu0 0
    %306 = vmatpush1.bf16.msra.mxu0 %v267
    %307 = vmatprep.subr.bf16.mxu0 0
    %308 = vmatpush1.bf16.msra.mxu0 %v268
    %309 = vmatprep.subr.bf16.mxu0 0
    %310 = vmatpush1.bf16.msra.mxu0 %v269
    %311 = vmatprep.subr.bf16.mxu0 0
    %312 = vmatpush1.bf16.msra.mxu0 %v270
    %313 = vmatprep.subr.bf16.mxu0 0
    %314 = vmatpush1.bf16.msra.mxu0 %v271
    %315 = vmatprep.subr.bf16.mxu0 0
    %316 = vmatpush1.bf16.msra.mxu0 %v272
    %317 = vmatprep.subr.bf16.mxu0 0
    %318 = vmatpush1.bf16.msra.mxu0 %v273
    %319 = vmatprep.subr.bf16.mxu0 0
    %320 = vmatpush1.bf16.msra.mxu0 %v274
    %321 = vmatprep.subr.bf16.mxu0 0
    %322 = vmatpush1.bf16.msra.mxu0 %v275
    %323 = vmatprep.subr.bf16.mxu0 0
    %324 = vmatpush1.bf16.msra.mxu0 %v276
    %325 = vmatprep.mubr.bf16.mxu0 %v157
    %326 = vmatmul.mubr.bf16.gmra.mrb[0].mxu0 %v156
    %v327 = vpop.f32.mrb[0].mxu0
    %v328 = vadd.f32 %v195, %v327
    %v329 = vpop.f32.mrb[0].mxu0
    %v330 = vpop.f32.mrb[0].mxu0
    %v331 = vpop.f32.mrb[0].mxu0
    %332 = vdwg.mxu0
    %v333 = vmax.f32 %v328, 0.0
    %v334 = vpack.c.bf16 %v333, %v333
    %v335 = vld [vmem:[%s5] sm:$0xf]
    %v336 = vld [vmem:[%s5 + $0x4] sm:$0xf]
    %v337 = vld [vmem:[%s5 + $0x8] sm:$0xf]
    %v338 = vld [vmem:[%s5 + $0xc] sm:$0xf]
    %v339 = vld [vmem:[%s5 + $0x10] sm:$0xf]
    %v340 = vld [vmem:[%s5 + $0x14] sm:$0xf]
    %v341 = vld [vmem:[%s5 + $0x18] sm:$0xf]
    %v342 = vld [vmem:[%s5 + $0x1c] sm:$0xf]
    %v343 = vld [vmem:[%s5 + $0x20] sm:$0xf]
    %v344 = vld [vmem:[%s5 + $0x24] sm:$0xf]
    %v345 = vld [vmem:[%s5 + $0x28] sm:$0xf]
    %v346 = vld [vmem:[%s5 + $0x2c] sm:$0xf]
    %v347 = vld [vmem:[%s5 + $0x30] sm:$0xf]
    %v348 = vld [vmem:[%s5 + $0x34] sm:$0xf]
    %v349 = vld [vmem:[%s5 + $0x38] sm:$0xf]
    %v350 = vld [vmem:[%s5 + $0x3c] sm:$0xf]
    %v351 = vld [vmem:[%s6] sm:$0x1]
    %v353 = vlaneseq
    %v354 = vshrl.u32 %v353, 7
    %v355 = vsub.s32 0, %v354
    %v356 = vrot.slane %v351, %v355
    %v374 = vunpack.c.l.b16 %v335
    %v375 = vunpack.c.l.b16 %v336
    %v376 = vunpack.c.l.b16 %v337
    %v377 = vunpack.c.l.b16 %v338
    %v378 = vunpack.c.l.b16 %v339
    %v379 = vunpack.c.l.b16 %v340
    %v380 = vunpack.c.l.b16 %v341
    %v381 = vunpack.c.l.b16 %v342
    %v382 = vunpack.c.l.b16 %v343
    %v383 = vunpack.c.l.b16 %v344
    %v384 = vunpack.c.l.b16 %v345
    %v385 = vunpack.c.l.b16 %v346
    %v386 = vunpack.c.l.b16 %v347
    %v387 = vunpack.c.l.b16 %v348
    %v388 = vunpack.c.l.b16 %v349
    %v389 = vunpack.c.l.b16 %v350
    %v390 = vpack.c.b16 %v375, %v374
    %v391 = vpack.c.b16 %v377, %v376
    %v392 = vpack.c.b16 %v379, %v378
    %v393 = vpack.c.b16 %v381, %v380
    %v394 = vpack.c.b16 %v383, %v382
    %v395 = vpack.c.b16 %v385, %v384
    %v396 = vpack.c.b16 %v387, %v386
    %v397 = vpack.c.b16 %v389, %v388
    %406 = vmatprep.subr.bf16.mxu0 0
    %407 = vmatpush1.bf16.msra.mxu0 %v390
    %408 = vmatprep.subr.bf16.mxu0 0
    %409 = vmatpush1.bf16.msra.mxu0 %v391
    %410 = vmatprep.subr.bf16.mxu0 0
    %411 = vmatpush1.bf16.msra.mxu0 %v392
    %412 = vmatprep.subr.bf16.mxu0 0
    %413 = vmatpush1.bf16.msra.mxu0 %v393
    %414 = vmatprep.subr.bf16.mxu0 0
    %415 = vmatpush1.bf16.msra.mxu0 %v394
    %416 = vmatprep.subr.bf16.mxu0 0
    %417 = vmatpush1.bf16.msra.mxu0 %v395
    %418 = vmatprep.subr.bf16.mxu0 0
    %419 = vmatpush1.bf16.msra.mxu0 %v396
    %420 = vmatprep.subr.bf16.mxu0 0
    %421 = vmatpush1.bf16.msra.mxu0 %v397
    %422 = vmatprep.subr.bf16.mxu0 0
    %423 = vmatpush1.bf16.msra.mxu0 0
    %424 = vmatprep.subr.bf16.mxu0 0
    %425 = vmatpush1.bf16.msra.mxu0 0
    %426 = vmatprep.subr.bf16.mxu0 0
    %427 = vmatpush1.bf16.msra.mxu0 0
    %428 = vmatprep.subr.bf16.mxu0 0
    %429 = vmatpush1.bf16.msra.mxu0 0
    %430 = vmatprep.subr.bf16.mxu0 0
    %431 = vmatpush1.bf16.msra.mxu0 0
    %432 = vmatprep.subr.bf16.mxu0 0
    %433 = vmatpush1.bf16.msra.mxu0 0
    %434 = vmatprep.subr.bf16.mxu0 0
    %435 = vmatpush1.bf16.msra.mxu0 0
    %436 = vmatprep.subr.bf16.mxu0 0
    %437 = vmatpush1.bf16.msra.mxu0 0
    %438 = vmatprep.mubr.bf16.mxu0 0
    %439 = vmatmul.mubr.bf16.gmra.mrb[0].mxu0 %v334
    %v440 = vpop.f32.mrb[0].mxu0
    %v441 = vadd.f32 %v356, %v440
    %v442 = vpop.f32.mrb[0].mxu0
    %v443 = vpop.f32.mrb[0].mxu0
    %v444 = vpop.f32.mrb[0].mxu0
    %445 = vdwg.mxu0
    %v446 = vmax.f32 %v441, 0.0
    %v447 = vpack.c.bf16 %v446, %v446
    %v448 = vld [vmem:[%s7] sm:$0xf]
    %v449 = vld [vmem:[%s7 + $0x4] sm:$0xf]
    %v450 = vld [vmem:[%s7 + $0x8] sm:$0xf]
    %v451 = vld [vmem:[%s7 + $0xc] sm:$0xf]
    %v452 = vld [vmem:[%s8] sm:$0x1]
    %v454 = vlaneseq
    %v455 = vshrl.u32 %v454, 7
    %v456 = vsub.s32 0, %v455
    %v457 = vrot.slane %v452, %v456
    %v463 = vunpack.c.l.b16 %v448
    %v464 = vunpack.c.l.b16 %v449
    %v465 = vunpack.c.l.b16 %v450
    %v466 = vunpack.c.l.b16 %v451
    %v467 = vpack.c.b16 %v464, %v463
    %v468 = vpack.c.b16 %v466, %v465
    %vm471 = vcmask 261120
    %v473 = vsel %vm471, %v447, 0
    %475 = vmatprep.subr.bf16.mxu0 0
    %476 = vmatpush1.bf16.msra.mxu0 %v467
    %477 = vmatprep.subr.bf16.mxu0 0
    %478 = vmatpush1.bf16.msra.mxu0 %v468
    %479 = vmatprep.subr.bf16.mxu0 0
    %480 = vmatpush1.bf16.msra.mxu0 0
    %481 = vmatprep.subr.bf16.mxu0 0
    %482 = vmatpush1.bf16.msra.mxu0 0
    %483 = vmatprep.subr.bf16.mxu0 0
    %484 = vmatpush1.bf16.msra.mxu0 0
    %485 = vmatprep.subr.bf16.mxu0 0
    %486 = vmatpush1.bf16.msra.mxu0 0
    %487 = vmatprep.subr.bf16.mxu0 0
    %488 = vmatpush1.bf16.msra.mxu0 0
    %489 = vmatprep.subr.bf16.mxu0 0
    %490 = vmatpush1.bf16.msra.mxu0 0
    %491 = vmatprep.subr.bf16.mxu0 0
    %492 = vmatpush1.bf16.msra.mxu0 0
    %493 = vmatprep.subr.bf16.mxu0 0
    %494 = vmatpush1.bf16.msra.mxu0 0
    %495 = vmatprep.subr.bf16.mxu0 0
    %496 = vmatpush1.bf16.msra.mxu0 0
    %497 = vmatprep.subr.bf16.mxu0 0
    %498 = vmatpush1.bf16.msra.mxu0 0
    %499 = vmatprep.subr.bf16.mxu0 0
    %500 = vmatpush1.bf16.msra.mxu0 0
    %501 = vmatprep.subr.bf16.mxu0 0
    %502 = vmatpush1.bf16.msra.mxu0 0
    %503 = vmatprep.subr.bf16.mxu0 0
    %504 = vmatpush1.bf16.msra.mxu0 0
    %505 = vmatprep.subr.bf16.mxu0 0
    %506 = vmatpush1.bf16.msra.mxu0 0
    %507 = vmatprep.mubr.bf16.mxu0 0
    %508 = vmatmul.mubr.bf16.gmra.mrb[0].mxu0 %v473
    %v509 = vpop.f32.mrb[0].mxu0
    %v510 = vadd.f32 %v457, %v509
    %v511 = vpop.f32.mrb[0].mxu0
    %v512 = vpop.f32.mrb[0].mxu0
    %v513 = vpop.f32.mrb[0].mxu0
    %514 = vdwg.mxu0
    %516 = vrot.lane.b32.xlu0 %v510, 32
    %v517 = vpop.permute.xlu0 %516
    %v519 = vsel %vm471, %v441, %v517
    %520 = vst [vmem:[%s9] sm:$0xff] %v519
    // Predicated region
    $region42: #{simple_fc_forward.1} parent=1 // pred_check
      _
    $region43: #{simple_fc_forward.1} parent=1 // pred_check_branch
      %522 = sbr.rel (0) target = $region45
    $region44: #{simple_fc_forward.1} parent=1 // pred_region
      _
    $region45: #{simple_fc_forward.1} parent=1 // pred_fallthru
      _
    // Predicated region
    $region46: #{simple_fc_forward.1} parent=1 // pred_check
      _
    $region47: #{simple_fc_forward.1} parent=1 // pred_check_branch
      %524 = sbr.rel (0) target = $region49
    $region48: #{simple_fc_forward.1} parent=1 // pred_region
      _
    $region49: #{simple_fc_forward.1} parent=1 // pred_fallthru
      _
    %525 = vsyncpa [#allocation3], 1

</llo_original>
